<compile_context>
chip_gen: v5e
topology: v5e:2x2
jax: 0.10.0
libtpu: 0.0.40
codegen_flags: <defaults>
</compile_context>

<pallas_src>
import jax
import jax.numpy as jnp
from jax.experimental import pallas as pl
from jax.experimental.pallas import tpu as pltpu


# --------------------------- latent path (no grid) ---------------------------
def _latent_kernel(pooled_ref, eps_ref, keep_ref,
                   w_enc_ref, b_enc_ref, w_mulv_ref, b_mulv_ref,
                   w_d1z_ref, b_d1_ref,
                   kld_ref, hbias_ref):
    L = eps_ref.shape[-1]

    # TODO(synk): exact Encoder submodule (CNN over embeddings) not provided in
    # the source; stand-in = (wrapper mean-pool) + Linear + ReLU -> context.
    context = jnp.maximum(
        jnp.dot(pooled_ref[...], w_enc_ref[...],
                preferred_element_type=jnp.float32) + b_enc_ref[...], 0.0)   # [B, L]

    # Fused mu|logvar projection: one MXU pass instead of two.
    mulv = jnp.dot(context, w_mulv_ref[...],
                   preferred_element_type=jnp.float32) + b_mulv_ref[...]     # [B, 2L]
    mu = mulv[:, :L]
    logvar = mulv[:, L:]

    std = jnp.exp(0.5 * logvar)
    # keep_ref already holds bernoulli(1-p) * 1/(1-p) (inverted dropout, with a
    # guard for p == 1 folded in by the wrapper).
    z = (eps_ref[...] * std + mu) * keep_ref[...]                            # [B, L]

    # KLD per batch element (mean over batch taken in the wrapper).
    # Reuse std*std == exp(logvar): saves a second EUP transcendental.
    kld_ref[...] = -0.5 * jnp.sum(logvar - mu * mu - std * std + 1.0,
                                  axis=1, keepdims=True)                     # [B, 1]

    # Per-batch decoder bias (z contribution + b_d1), expanded to rows outside.
    hbias_ref[...] = (jnp.dot(z, w_d1z_ref[...],
                              preferred_element_type=jnp.float32)
                      + b_d1_ref[...])                                       # [B, D]


# --------------------- hidden pass (rows only, run ONCE) ---------------------
def _hidden_kernel(dec_ref, hbias_ref, w1_ref, h_ref):
    # TODO(synk): exact Decoder (conv_decoder + GRU rnn_decoder) not provided;
    # stand-in = MLP over [decoder_embedding ; z].  This is the hidden layer,
    # computed once per row instead of once per (row, vocab-tile).
    hd = jnp.dot(dec_ref[...], w1_ref[...],
                 preferred_element_type=jnp.float32)                         # [tr, D] f32
    h_ref[...] = jnp.maximum(hd + hbias_ref[...], 0.0).astype(jnp.bfloat16)  # [tr, D] bf16


# ----------------------- decoder path (vocab x row grid) ---------------------
def _decoder_kernel(dec_ref, h_ref,
                    w_out_ref, b_out_ref, w_aux_ref, b_aux_ref,
                    logits_ref, aux_ref):
    # Main logits from the precomputed hidden layer, aux logits straight from
    # the decoder embeddings.  Both are pure (row-tile) x (weight-slab) MXU
    # passes with f32 accumulation; outputs stored in logits_ref.dtype (bf16
    # by default to halve HBM writeback).
    logits_ref[...] = (jnp.dot(h_ref[...], w_out_ref[...],
                               preferred_element_type=jnp.float32)
                       + b_out_ref[...]).astype(logits_ref.dtype)            # [tr, tv]
    aux_ref[...] = (jnp.dot(dec_ref[...], w_aux_ref[...],
                            preferred_element_type=jnp.float32)
                    + b_aux_ref[...]).astype(aux_ref.dtype)                  # [tr, tv]


# --------------------------------- helpers -----------------------------------
def _round_up(x, q):
    return ((x + q - 1) // q) * q


def _pad_rows(x, rows):
    pad = rows - x.shape[0]
    if pad:
        x = jnp.pad(x, ((0, pad),) + ((0, 0),) * (x.ndim - 1))
    return x


def _pad_cols(x, cols):
    pad = cols - x.shape[-1]
    if pad:
        x = jnp.pad(x, ((0, 0),) * (x.ndim - 1) + ((0, pad),))
    return x


def _vmem_capacity_bytes():
    try:
        info = pltpu.get_tpu_info()
        cap = getattr(info, "vmem_capacity_bytes", None)
        if cap:
            return int(cap)
    except Exception:
        pass
    return 64 * 1024 * 1024   # conservative (v7x per-TC) when undetectable


def _decoder_vmem_limit(tr, tv, E, D, out_bytes):
    """vmem_limit_bytes from the actual double-buffered decoder footprint."""
    per_step = (tr * E * 2 + tr * D * 2        # dec, h row tiles (bf16)
                + D * tv * 2 + E * tv * 2      # w_out, w_aux slabs (bf16)
                + 2 * tv * 4                   # bias slabs (f32)
                + 2 * tr * tv * out_bytes)     # logits + aux output tiles
    footprint = 2 * per_step                   # double-buffered pipeline
    cap = _vmem_capacity_bytes()
    return max(16 << 20, min(int(0.75 * cap), max(32 << 20, int(1.5 * footprint))))


def init_params(key, vocab_size, embed_size, latent_size, decoder_size):
    def xavier(k, shape):
        fan_in, fan_out = shape[0], shape[-1]
        std = (2.0 / (fan_in + fan_out)) ** 0.5
        return std * jax.random.normal(k, shape, jnp.float32)

    ks = jax.random.split(key, 9)
    return {
        # Embedding stored in bf16: the gather emits bf16 directly (halves
        # gather traffic and removes a separate full-size cast pass).
        "embed": xavier(ks[0], (vocab_size, embed_size)).astype(jnp.bfloat16),
        "w_enc": xavier(ks[1], (embed_size, latent_size)),
        "b_enc": jnp.zeros((1, latent_size), jnp.float32),
        "w_mu":  xavier(ks[2], (latent_size, latent_size)),
        "b_mu":  jnp.zeros((1, latent_size), jnp.float32),
        "w_lv":  xavier(ks[3], (latent_size, latent_size)),
        "b_lv":  jnp.zeros((1, latent_size), jnp.float32),
        "w_d1e": xavier(ks[4], (embed_size, decoder_size)),
        "w_d1z": xavier(ks[5], (latent_size, decoder_size)),
        "b_d1":  jnp.zeros((1, decoder_size), jnp.float32),
        "w_out": xavier(ks[6], (decoder_size, vocab_size)),
        "b_out": jnp.zeros((1, vocab_size), jnp.float32),
        "w_aux": xavier(ks[7], (embed_size, vocab_size)),
        "b_aux": jnp.zeros((1, vocab_size), jnp.float32),
    }


def vae_forward(params, drop_prob, encoder_input, decoder_input, key,
                *, row_tile=256, v_tile=512, logits_dtype=jnp.bfloat16):
    """Mirrors VAE.forward(drop_prob, encoder_input, decoder_input, z=None)."""
    B, S = encoder_input.shape
    E = params["embed"].shape[1]
    L = params["w_mu"].shape[0]
    D = params["w_d1e"].shape[1]
    V = params["w_out"].shape[1]
    BS = B * S

    # Embedding lookups (gather) — glue, stays in plain JAX; table is bf16.
    enc_emb = jnp.take(params["embed"], encoder_input, axis=0)            # [B,S,E] bf16
    dec_emb = jnp.take(params["embed"], decoder_input, axis=0)            # [B,S,E] bf16

    # Mean-pool in the wrapper: latent kernel only DMAs [B, E], not [B, S, E].
    pooled = jnp.mean(enc_emb, axis=1, dtype=jnp.float32)                 # [B, E] f32

    k_eps, k_drop = jax.random.split(key)
    eps = jax.random.normal(k_eps, (B, L), jnp.float32)                   # ~ t.randn
    # Inverted-dropout keep mask with the 1/(1-p) scale folded in (guard p==1).
    scale = 0.0 if drop_prob >= 1.0 else 1.0 / (1.0 - drop_prob)
    keep = (jax.random.bernoulli(k_drop, 1.0 - drop_prob, (B, L))
            .astype(jnp.float32) * scale)

    # Fused mu|logvar weights -> one dot in the kernel.
    w_mulv = jnp.concatenate([params["w_mu"], params["w_lv"]], axis=1)    # [L, 2L]
    b_mulv = jnp.concatenate([params["b_mu"], params["b_lv"]], axis=1)    # [1, 2L]

    vmem = pl.BlockSpec(memory_space=pltpu.MemorySpace.VMEM)
    kld_b, hbias = pl.pallas_call(
        _latent_kernel,
        out_shape=(jax.ShapeDtypeStruct((B, 1), jnp.float32),             # per-batch KLD
                   jax.ShapeDtypeStruct((B, D), jnp.float32)),            # z @ W_d1z + b_d1
        in_specs=[vmem] * 9,
        out_specs=(vmem, vmem),
    )(pooled, eps, keep, params["w_enc"], params["b_enc"],
      w_mulv, b_mulv, params["w_d1z"], params["b_d1"])

    # ------------------------- tiling / padding ------------------------------
    # 128-aligned row tiles / 256-aligned vocab tiles (MXU-friendly); rows and
    # vocab are padded to the tile quantum (no silent full-dim fallback).
    tr = min(_round_up(max(row_tile, 128), 128), _round_up(BS, 128))
    tv = min(_round_up(max(v_tile, 128), 256), _round_up(V, 128))
    BS_pad = _round_up(BS, tr)
    V_pad = _round_up(V, tv)
    n_rows = BS_pad // tr

    dec_flat = _pad_rows(dec_emb.reshape(BS, E), BS_pad)                  # [BS_pad,E] bf16
    # Per-row latent bias: materialized ONCE and read ONCE by the hidden pass
    # (no longer re-streamed for every vocab tile).
    hbias_rows = _pad_rows(jnp.repeat(hbias, S, axis=0), BS_pad)          # [BS_pad,D] f32

    w1_bf = params["w_d1e"].astype(jnp.bfloat16)
    w_out_bf = _pad_cols(params["w_out"].astype(jnp.bfloat16), V_pad)
    w_aux_bf = _pad_cols(params["w_aux"].astype(jnp.bfloat16), V_pad)
    b_out = _pad_cols(params["b_out"], V_pad)
    b_aux = _pad_cols(params["b_aux"], V_pad)

    # ------------------ hidden pass: h = relu(dec@W1 + hbias) ----------------
    h_flat = pl.pallas_call(
        _hidden_kernel,
        out_shape=jax.ShapeDtypeStruct((BS_pad, D), jnp.bfloat16),
        grid=(n_rows,),
        in_specs=[
            pl.BlockSpec((tr, E), lambda i: (i, 0)),      # decoder embedding rows
            pl.BlockSpec((tr, D), lambda i: (i, 0)),      # per-row latent bias
            pl.BlockSpec((E, D),  lambda i: (0, 0)),      # w_d1e (resident, tiny)
        ],
        out_specs=pl.BlockSpec((tr, D), lambda i: (i, 0)),
        compiler_params=pltpu.CompilerParams(
            dimension_semantics=("parallel",)),
    )(dec_flat, hbias_rows, w1_bf)

    # --------------- decoder: vocab OUTER (sharded on v7x) x rows ------------
    grid = (V_pad // tv, n_rows)
    out_bytes = jnp.dtype(logits_dtype).itemsize
    vmem_limit = _decoder_vmem_limit(tr, tv, E, D, out_bytes)

    logits_flat, aux_flat = pl.pallas_call(
        _decoder_kernel,
        out_shape=(jax.ShapeDtypeStruct((BS_pad, V_pad), logits_dtype),
                   jax.ShapeDtypeStruct((BS_pad, V_pad), logits_dtype)),
        grid=grid,
        in_specs=[
            pl.BlockSpec((tr, E), lambda j, i: (i, 0)),   # dec rows (aux matmul)
            pl.BlockSpec((tr, D), lambda j, i: (i, 0)),   # precomputed hidden rows
            pl.BlockSpec((D, tv), lambda j, i: (0, j)),   # w_out column slab
            pl.BlockSpec((1, tv), lambda j, i: (0, j)),   # b_out slab
            pl.BlockSpec((E, tv), lambda j, i: (0, j)),   # w_aux column slab
            pl.BlockSpec((1, tv), lambda j, i: (0, j)),   # b_aux slab
        ],
        out_specs=(pl.BlockSpec((tr, tv), lambda j, i: (i, j)),
                   pl.BlockSpec((tr, tv), lambda j, i: (i, j))),
        compiler_params=pltpu.CompilerParams(
            # vocab axis 'parallel' -> v7x megacore splits disjoint weight
            # slabs; inner row axis 'arbitrary' (costs nothing on v5e/v6e).
            dimension_semantics=("parallel", "arbitrary"),
            vmem_limit_bytes=vmem_limit),
    )(dec_flat, h_flat, w_out_bf, b_out, w_aux_bf, b_aux)
    # TODO(synk): if xprof shows exposed output DMA on v5e, add
    # pipeline_mode=pl.Buffered(3) on the out_specs; on v7x, fp8 weight slabs
    # (with f32 accumulation) would further halve weight DMA/VMEM.

    logits = logits_flat[:BS, :V].reshape(B, S, V)
    aux_logits = aux_flat[:BS, :V].reshape(B, S, V)
    kld = jnp.mean(kld_b)
    return logits, aux_logits, kld


if __name__ == "__main__":
    # Small config consistent with the module's constructor args, large enough
    # (vocab 512, B*S = 256) to exercise a real 2x2 (vocab x row) grid with
    # MXU-aligned tiles (tv=256, tr=128).
    vocab_size, embed_size, latent_size = 512, 64, 32
    decoder_size, decoder_num_layers, max_seq_len = 64, 1, 16   # num_layers unused by stand-in
    batch, seq = 16, max_seq_len
    drop_prob = 0.3

    root = jax.random.PRNGKey(0)
    k_params, k_enc, k_dec, k_noise = jax.random.split(root, 4)

    params = init_params(k_params, vocab_size, embed_size, latent_size, decoder_size)
    encoder_input = jax.random.randint(k_enc, (batch, seq), 0, vocab_size, jnp.int32)
    decoder_input = jax.random.randint(k_dec, (batch, seq), 0, vocab_size, jnp.int32)

    logits, aux_logits, kld = vae_forward(params, drop_prob,
                                          encoder_input, decoder_input, k_noise,
                                          row_tile=128, v_tile=256)
    jax.block_until_ready((logits, aux_logits, kld))

    assert logits.shape == (batch, seq, vocab_size)
    assert aux_logits.shape == (batch, seq, vocab_size)
    assert kld.shape == ()
    assert bool(jnp.isfinite(kld))
    print("KERNEL_OK")
</pallas_src>

<mosaic_0001>
module attributes {stable_mosaic.version = 11 : i64} {
  func.func @_latent_kernel(%arg0: memref<16x64xf32, #tpu.memory_space<vmem>>, %arg1: memref<16x32xf32, #tpu.memory_space<vmem>>, %arg2: memref<16x32xf32, #tpu.memory_space<vmem>>, %arg3: memref<64x32xf32, #tpu.memory_space<vmem>>, %arg4: memref<1x32xf32, #tpu.memory_space<vmem>>, %arg5: memref<32x64xf32, #tpu.memory_space<vmem>>, %arg6: memref<1x64xf32, #tpu.memory_space<vmem>>, %arg7: memref<32x64xf32, #tpu.memory_space<vmem>>, %arg8: memref<1x64xf32, #tpu.memory_space<vmem>>, %arg9: memref<16x1xf32, #tpu.memory_space<vmem>>, %arg10: memref<16x64xf32, #tpu.memory_space<vmem>>) attributes {dimension_semantics = [], scalar_prefetch = 0 : i64, scratch_operands = 0 : i64, tpu.core_type = #tpu.core_type<tc>} {
    %c0 = arith.constant 0 : index
    %c0_0 = arith.constant 0 : index
    %0 = vector.load %arg0[%c0, %c0_0] : memref<16x64xf32, #tpu.memory_space<vmem>>, vector<16x64xf32>
    %c0_1 = arith.constant 0 : index
    %c0_2 = arith.constant 0 : index
    %1 = vector.load %arg3[%c0_1, %c0_2] : memref<64x32xf32, #tpu.memory_space<vmem>>, vector<64x32xf32>
    %cst = arith.constant dense<0.000000e+00> : vector<16x32xf32>
    %2 = tpu.matmul %0, %1, %cst {dimension_numbers = #tpu.dot_dimension_numbers<[1], [0], [0], [1], [0, 0, 1, 1], [], []>} : vector<16x64xf32>, vector<64x32xf32>, vector<16x32xf32> -> vector<16x32xf32>
    %c0_3 = arith.constant 0 : index
    %c0_4 = arith.constant 0 : index
    %3 = vector.load %arg4[%c0_3, %c0_4] : memref<1x32xf32, #tpu.memory_space<vmem>>, vector<1x32xf32>
    %4 = vector.broadcast %3 : vector<1x32xf32> to vector<16x32xf32>
    %5 = arith.addf %2, %4 : vector<16x32xf32>
    %cst_5 = arith.constant 0.000000e+00 : f32
    %6 = vector.broadcast %cst_5 : f32 to vector<16x32xf32>
    %7 = arith.maximumf %5, %6 : vector<16x32xf32>
    %c0_6 = arith.constant 0 : index
    %c0_7 = arith.constant 0 : index
    %8 = vector.load %arg5[%c0_6, %c0_7] : memref<32x64xf32, #tpu.memory_space<vmem>>, vector<32x64xf32>
    %cst_8 = arith.constant dense<0.000000e+00> : vector<16x64xf32>
    %9 = tpu.matmul %7, %8, %cst_8 {dimension_numbers = #tpu.dot_dimension_numbers<[1], [0], [0], [1], [0, 0, 1, 1], [], []>} : vector<16x32xf32>, vector<32x64xf32>, vector<16x64xf32> -> vector<16x64xf32>
    %c0_9 = arith.constant 0 : index
    %c0_10 = arith.constant 0 : index
    %10 = vector.load %arg6[%c0_9, %c0_10] : memref<1x64xf32, #tpu.memory_space<vmem>>, vector<1x64xf32>
    %11 = vector.broadcast %10 : vector<1x64xf32> to vector<16x64xf32>
    %12 = arith.addf %9, %11 : vector<16x64xf32>
    %13 = vector.extract_strided_slice %12 {offsets = [0, 0], sizes = [16, 32], strides = [1, 1]} : vector<16x64xf32> to vector<16x32xf32>
    %14 = vector.extract_strided_slice %12 {offsets = [0, 32], sizes = [16, 32], strides = [1, 1]} : vector<16x64xf32> to vector<16x32xf32>
    %cst_11 = arith.constant 5.000000e-01 : f32
    %15 = vector.broadcast %cst_11 : f32 to vector<16x32xf32>
    %16 = arith.mulf %15, %14 : vector<16x32xf32>
    %17 = math.exp %16 : vector<16x32xf32>
    %c0_12 = arith.constant 0 : index
    %c0_13 = arith.constant 0 : index
    %18 = vector.load %arg1[%c0_12, %c0_13] : memref<16x32xf32, #tpu.memory_space<vmem>>, vector<16x32xf32>
    %19 = arith.mulf %18, %17 : vector<16x32xf32>
    %20 = arith.addf %19, %13 : vector<16x32xf32>
    %c0_14 = arith.constant 0 : index
    %c0_15 = arith.constant 0 : index
    %21 = vector.load %arg2[%c0_14, %c0_15] : memref<16x32xf32, #tpu.memory_space<vmem>>, vector<16x32xf32>
    %22 = arith.mulf %20, %21 : vector<16x32xf32>
    %23 = arith.mulf %13, %13 : vector<16x32xf32>
    %24 = arith.subf %14, %23 : vector<16x32xf32>
    %25 = arith.mulf %17, %17 : vector<16x32xf32>
    %26 = arith.subf %24, %25 : vector<16x32xf32>
    %cst_16 = arith.constant 1.000000e+00 : f32
    %27 = vector.broadcast %cst_16 : f32 to vector<16x32xf32>
    %28 = arith.addf %26, %27 : vector<16x32xf32>
    %cst_17 = arith.constant dense<0.000000e+00> : vector<16xf32>
    %29 = vector.multi_reduction <add>, %28, %cst_17 [1] : vector<16x32xf32> to vector<16xf32>
    %30 = vector.shape_cast %29 : vector<16xf32> to vector<16x1xf32>
    %cst_18 = arith.constant -5.000000e-01 : f32
    %31 = vector.broadcast %cst_18 : f32 to vector<16x1xf32>
    %32 = arith.mulf %31, %30 : vector<16x1xf32>
    %c0_19 = arith.constant 0 : index
    %c0_20 = arith.constant 0 : index
    %33 = vector.load %arg9[%c0_19, %c0_20] : memref<16x1xf32, #tpu.memory_space<vmem>>, vector<16x1xf32>
    tpu.vector_store %arg9[%c0_19, %c0_20], %32 {strides = array<i32>} : memref<16x1xf32, #tpu.memory_space<vmem>>, vector<16x1xf32>,
    %c0_21 = arith.constant 0 : index
    %c0_22 = arith.constant 0 : index
    %34 = vector.load %arg7[%c0_21, %c0_22] : memref<32x64xf32, #tpu.memory_space<vmem>>, vector<32x64xf32>
    %cst_23 = arith.constant dense<0.000000e+00> : vector<16x64xf32>
    %35 = tpu.matmul %22, %34, %cst_23 {dimension_numbers = #tpu.dot_dimension_numbers<[1], [0], [0], [1], [0, 0, 1, 1], [], []>} : vector<16x32xf32>, vector<32x64xf32>, vector<16x64xf32> -> vector<16x64xf32>
    %c0_24 = arith.constant 0 : index
    %c0_25 = arith.constant 0 : index
    %36 = vector.load %arg8[%c0_24, %c0_25] : memref<1x64xf32, #tpu.memory_space<vmem>>, vector<1x64xf32>
    %37 = vector.broadcast %36 : vector<1x64xf32> to vector<16x64xf32>
    %38 = arith.addf %35, %37 : vector<16x64xf32>
    %c0_26 = arith.constant 0 : index
    %c0_27 = arith.constant 0 : index
    %39 = vector.load %arg10[%c0_26, %c0_27] : memref<16x64xf32, #tpu.memory_space<vmem>>, vector<16x64xf32>
    tpu.vector_store %arg10[%c0_26, %c0_27], %38 {strides = array<i32>} : memref<16x64xf32, #tpu.memory_space<vmem>>, vector<16x64xf32>,
    return
  }
}

</mosaic_0001>

<llo_original>
// kernel: tpu_custom_call.1
$region0: #{tpu_custom_call.1}
  #allocation0 [shape = 'u32[]', space=smem, size = 0x4, offset = 0x4, fixed_abs, tag = 'smem constant byte address 0x4 - core index']
  #allocation1 [shape = 'u32[72,128]{1,0:T(1,128)}', space=vmem, size = 0x9000, scoped, tag = 'internal scratch']
  %s0 = inlined_call_operand.vmem [shape: f32[16,64], index: 0, kind: input, shape index: {}]
  %s1 = inlined_call_operand.vmem [shape: f32[16,32], index: 1, kind: input, shape index: {}]
  %s2 = inlined_call_operand.hbm [shape: f32[16,32], index: 2, kind: input, shape index: {}]
  %s3 = inlined_call_operand.vmem [shape: f32[64,32], index: 3, kind: input, shape index: {}]
  %s4 = inlined_call_operand.vmem [shape: f32[1,32], index: 4, kind: input, shape index: {}]
  %s5 = inlined_call_operand.vmem [shape: f32[32,64], index: 5, kind: input, shape index: {}]
  %s6 = inlined_call_operand.vmem [shape: f32[1,64], index: 6, kind: input, shape index: {}]
  %s7 = inlined_call_operand.vmem [shape: f32[32,64], index: 7, kind: input, shape index: {}]
  %s8 = inlined_call_operand.vmem [shape: f32[1,64], index: 8, kind: input, shape index: {}]
  %s9 = inlined_call_operand.vmem [shape: f32[16,1], index: 9, kind: output, shape index: {0}]
  %s10 = inlined_call_operand.hbm [shape: f32[16,64], index: 10, kind: output, shape index: {1}]
  %11 = xla_tuple %s9, %s10
  %s12 = sld [smem:[#allocation0]]
  $region58: #{tpu_custom_call.1} parent=0
    _
  %s14 = ssub.s32 1, %s12
  %s15 = scalar_select 0, %s14, %s12
  $region1: #{tpu_custom_call.1} parent=0
    #allocation2 [shape = 'u8[8192]{0}', space=vmem, size = 0x2000, scoped, tag = 'input window, operand 2, single buffered']
    #allocation3 [shape = 's32[1]{0}', space=sflag, size = 0x4, scoped, tag = 'scoped memory for tpu_custom_call.1']
    #allocation4 [shape = 's32[1]{0}', space=sflag, size = 0x4, scoped, tag = 'scoped memory for tpu_custom_call.1']
    #allocation5 [shape = 'u8[8192]{0}', space=vmem, size = 0x2000, scoped, tag = 'output window, operand 1, single buffered']
    %16 = vsyncpa [#allocation3], 0
    %17 = vsyncpa [#allocation4], 0
    // Predicated region
    $region2: #{tpu_custom_call.1} parent=1 // pred_check
      _
    $region3: #{tpu_custom_call.1} parent=1 // pred_check_branch
      %19 = sbr.rel (0) target = $region5
    $region4: #{tpu_custom_call.1} parent=1 // pred_region
      _
    $region5: #{tpu_custom_call.1} parent=1 // pred_fallthru
      _
    // Predicated region
    $region6: #{tpu_custom_call.1} parent=1 // pred_check
      _
    $region7: #{tpu_custom_call.1} parent=1 // pred_check_branch
      %21 = sbr.rel (0) target = $region9
    $region8: #{tpu_custom_call.1} parent=1 // pred_region
      _
    $region9: #{tpu_custom_call.1} parent=1 // pred_fallthru
      _
    // Predicated region
    $region10: #{tpu_custom_call.1} parent=1 // pred_check
      _
    $region11: #{tpu_custom_call.1} parent=1 // pred_check_branch
      %23 = sbr.rel (0) target = $region13
    $region12: #{tpu_custom_call.1} parent=1 // pred_region
      %25 = vsyncadd [#allocation3], 0
      %s26 = sshll.u32 %s2, 4
      %s27 = int_to_ptr.hbm [resolvable:$true] %s26
      %s28 = sshll.u32 [#allocation2], 4
      %s29 = int_to_ptr.vmem [resolvable:$true] %s28
      %34 = dma.hbm_to_vmem [thread:$0]  %s27, 256, %s29, [#allocation3], 128, 128, 8
    $region13: #{tpu_custom_call.1} parent=1 // pred_fallthru
      _
    // Predicated region
    $region14: #{tpu_custom_call.1} parent=1 // pred_check
      _
    $region15: #{tpu_custom_call.1} parent=1 // pred_check_branch
      %36 = sbr.rel (0) target = $region17
    $region16: #{tpu_custom_call.1} parent=1 // pred_region
      _
    $region17: #{tpu_custom_call.1} parent=1 // pred_fallthru
      _
    // Predicated region
    $region18: #{tpu_custom_call.1} parent=1 // pred_check
      _
    $region19: #{tpu_custom_call.1} parent=1 // pred_check_branch
      %38 = sbr.rel (0) target = $region21
    $region20: #{tpu_custom_call.1} parent=1 // pred_region
      _
    $region21: #{tpu_custom_call.1} parent=1 // pred_fallthru
      _
    // Predicated region
    $region22: #{tpu_custom_call.1} parent=1 // pred_check
      _
    $region23: #{tpu_custom_call.1} parent=1 // pred_check_branch
      %40 = sbr.rel (0) target = $region25
    $region24: #{tpu_custom_call.1} parent=1 // pred_region
      _
    $region25: #{tpu_custom_call.1} parent=1 // pred_fallthru
      _
    // Predicated region
    $region26: #{tpu_custom_call.1} parent=1 // pred_check
      _
    $region27: #{tpu_custom_call.1} parent=1 // pred_check_branch
      %42 = sbr.rel (0) target = $region29
    $region28: #{tpu_custom_call.1} parent=1 // pred_region
      _
    $region29: #{tpu_custom_call.1} parent=1 // pred_fallthru
      _
    // Predicated region
    $region30: #{tpu_custom_call.1} parent=1 // pred_check
      _
    $region31: #{tpu_custom_call.1} parent=1 // pred_check_branch
      %44 = sbr.rel (0) target = $region33
    $region32: #{tpu_custom_call.1} parent=1 // pred_region
      _
    $region33: #{tpu_custom_call.1} parent=1 // pred_fallthru
      _
    // Predicated region
    $region34: #{tpu_custom_call.1} parent=1 // pred_check
      _
    $region35: #{tpu_custom_call.1} parent=1 // pred_check_branch
      %46 = sbr.rel (0) target = $region37
    $region36: #{tpu_custom_call.1} parent=1 // pred_region
      _
    $region37: #{tpu_custom_call.1} parent=1 // pred_fallthru
      _
    // Predicated region
    $region38: #{tpu_custom_call.1} parent=1 // pred_check
      _
    $region39: #{tpu_custom_call.1} parent=1 // pred_check_branch
      %48 = sbr.rel (0) target = $region41
    $region40: #{tpu_custom_call.1} parent=1 // pred_region
      %50 = dma.done [#allocation3], 256
    $region41: #{tpu_custom_call.1} parent=1 // pred_fallthru
      _
    %v51 = vld [vmem:[%s0] sm:$0xff]
    %v52 = vld [vmem:[%s0 + $0x8] sm:$0xff]
    %v53 = vld [vmem:[%s3] sm:$0xff]
    %v54 = vld [vmem:[%s3 + $0x8] sm:$0xff]
    %v55 = vld [vmem:[%s3 + $0x10] sm:$0xff]
    %v56 = vld [vmem:[%s3 + $0x18] sm:$0xff]
    %v57 = vld [vmem:[%s3 + $0x20] sm:$0xff]
    %v58 = vld [vmem:[%s3 + $0x28] sm:$0xff]
    %v59 = vld [vmem:[%s3 + $0x30] sm:$0xff]
    %v60 = vld [vmem:[%s3 + $0x38] sm:$0xff]
    %v61 = vld [vmem:[%s4] sm:$0x1]
    %v63 = vperm.slane %v61, 0
    %vm65 = vcmask 523264
    %v67 = vsel %vm65, %v51, 0
    %v70 = vsel %vm65, %v52, 0
    %72 = vmatpush.msra.mxu0 0.0
    %73 = vmatpush.msra.mxu0 0.0
    %74 = vmatpush.msra.mxu0 0.0
    %75 = vmatpush.msra.mxu0 0.0
    %76 = vmatpush.msra.mxu0 0.0
    %77 = vmatpush.msra.mxu0 0.0
    %78 = vmatpush.msra.mxu0 0.0
    %79 = vmatpush.msra.mxu0 0.0
    %80 = vmatpush.msra.mxu0 %v60
    %81 = vmatpush.msra.mxu0 %v59
    %82 = vmatpush.msra.mxu0 %v58
    %83 = vmatpush.msra.mxu0 %v57
    %84 = vmatpush.msra.mxu0 %v56
    %85 = vmatpush.msra.mxu0 %v55
    %86 = vmatpush.msra.mxu0 %v54
    %87 = vmatpush.msra.mxu0 %v53
    %88 = vmatmul.f32.gmra.mxu0 %v67
    %v89 = vpop.f32.mrf.mxu0
    %v90 = vadd.f32 %v63, %v89
    %91 = vmatmul.f32.gmra.mxu0 %v70
    %v92 = vpop.f32.mrf.mxu0
    %v93 = vadd.f32 %v63, %v92
    %94 = vdwg.mxu0
    %v95 = vmax.f32 %v90, 0.0
    %v96 = vmax.f32 %v93, 0.0
    %v97 = vld [vmem:[%s5] sm:$0xff]
    %v98 = vld [vmem:[%s5 + $0x8] sm:$0xff]
    %v99 = vld [vmem:[%s5 + $0x10] sm:$0xff]
    %v100 = vld [vmem:[%s5 + $0x18] sm:$0xff]
    %v101 = vld [vmem:[%s6] sm:$0x1]
    %v103 = vperm.slane %v101, 0
    %vm105 = vcmask 261120
    %v107 = vsel %vm105, %v95, 0
    %v110 = vsel %vm105, %v96, 0
    %112 = vmatpush.msra.mxu0 0.0
    %113 = vmatpush.msra.mxu0 0.0
    %114 = vmatpush.msra.mxu0 0.0
    %115 = vmatpush.msra.mxu0 0.0
    %116 = vmatpush.msra.mxu0 0.0
    %117 = vmatpush.msra.mxu0 0.0
    %118 = vmatpush.msra.mxu0 0.0
    %119 = vmatpush.msra.mxu0 0.0
    %120 = vmatpush.msra.mxu0 0.0
    %121 = vmatpush.msra.mxu0 0.0
    %122 = vmatpush.msra.mxu0 0.0
    %123 = vmatpush.msra.mxu0 0.0
    %124 = vmatpush.msra.mxu0 %v100
    %125 = vmatpush.msra.mxu0 %v99
    %126 = vmatpush.msra.mxu0 %v98
    %127 = vmatpush.msra.mxu0 %v97
    %128 = vmatmul.f32.gmra.mxu0 %v107
    %v129 = vpop.f32.mrf.mxu0
    %v130 = vadd.f32 %v103, %v129
    %131 = vmatmul.f32.gmra.mxu0 %v110
    %v132 = vpop.f32.mrf.mxu0
    %v133 = vadd.f32 %v103, %v132
    %134 = vdwg.mxu0
    %v135 = vmul.f32 %v130, 0.5
    %v136 = vmul.f32 %v133, 0.5
    %v137 = vmul.f32 %v135, 1.442695
    %v138 = vpow.pop %v137
    %v139 = vmul.f32 %v136, 1.442695
    %v140 = vpow.pop %v139
    %v141 = vld [vmem:[%s1] sm:$0xff]
    %v142 = vld [vmem:[%s1 + $0x8] sm:$0xff]
    %145 = vrot.lane.b32.xlu0 %v138, 96
    %v146 = vpop.permute.xlu0 %145
    %147 = vrot.lane.b32.xlu0 %v140, 96
    %v148 = vpop.permute.xlu0 %147
    %v151 = vmul.f32 %v141, %v146
    %v152 = vmul.f32 %v142, %v148
    %v153 = vadd.f32 %v151, %v130
    %v154 = vadd.f32 %v152, %v133
    %v155 = vld [vmem:[#allocation2] sm:$0xff]
    %v156 = vld [vmem:[#allocation2 + $0x8] sm:$0xff]
    %v157 = vmul.f32 %v153, %v155
    %v158 = vmul.f32 %v154, %v156
    %v159 = vmul.f32 %v130, %v130
    %v160 = vmul.f32 %v133, %v133
    %163 = vrot.lane.b32.xlu0 %v159, 32
    %v164 = vpop.permute.xlu0 %163
    %165 = vrot.lane.b32.xlu0 %v160, 32
    %v166 = vpop.permute.xlu0 %165
    %v169 = vsub.f32 %v130, %v164
    %v170 = vsub.f32 %v133, %v166
    %v171 = vmul.f32 %v138, %v138
    %v172 = vmul.f32 %v140, %v140
    %v173 = vsub.f32 %v169, %v171
    %v174 = vsub.f32 %v170, %v172
    %v175 = vadd.f32 %v173, 1.0
    %v176 = vadd.f32 %v174, 1.0
    %179 = vrot.lane.b32.xlu0 %v175, 96
    %v180 = vpop.permute.xlu0 %179
    %181 = vrot.lane.b32.xlu0 %v176, 96
    %v182 = vpop.permute.xlu0 %181
    %v185 = vsel %vm105, %v180, 0.0
    %186 = vadd.xlane.f32.xlu0 %v185
    %v187 = vpop.xlane.xlu0 %186
    %v188 = vsel %vm105, %v182, 0.0
    %189 = vadd.xlane.f32.xlu0 %v188
    %v190 = vpop.xlane.xlu0 %189
    %v191 = vmul.f32 %v187, -0.5
    %v192 = vmul.f32 %v190, -0.5
    %vm193 = vcmask 7168
    %194 = vst.msk [vmem:[%s9] sm:$0xff] %vm193, %v191
    %195 = vst.msk [vmem:[%s9 + $0x8] sm:$0xff] %vm193, %v192
    %v196 = vld [vmem:[%s7] sm:$0xff]
    %v197 = vld [vmem:[%s7 + $0x8] sm:$0xff]
    %v198 = vld [vmem:[%s7 + $0x10] sm:$0xff]
    %v199 = vld [vmem:[%s7 + $0x18] sm:$0xff]
    %v200 = vld [vmem:[%s8] sm:$0x1]
    %v202 = vperm.slane %v200, 0
    %v205 = vsel %vm105, %v157, 0
    %v208 = vsel %vm105, %v158, 0
    %210 = vmatpush.msra.mxu0 0.0
    %211 = vmatpush.msra.mxu0 0.0
    %212 = vmatpush.msra.mxu0 0.0
    %213 = vmatpush.msra.mxu0 0.0
    %214 = vmatpush.msra.mxu0 0.0
    %215 = vmatpush.msra.mxu0 0.0
    %216 = vmatpush.msra.mxu0 0.0
    %217 = vmatpush.msra.mxu0 0.0
    %218 = vmatpush.msra.mxu0 0.0
    %219 = vmatpush.msra.mxu0 0.0
    %220 = vmatpush.msra.mxu0 0.0
    %221 = vmatpush.msra.mxu0 0.0
    %222 = vmatpush.msra.mxu0 %v199
    %223 = vmatpush.msra.mxu0 %v198
    %224 = vmatpush.msra.mxu0 %v197
    %225 = vmatpush.msra.mxu0 %v196
    %226 = vmatmul.f32.gmra.mxu0 %v205
    %v227 = vpop.f32.mrf.mxu0
    %v228 = vadd.f32 %v202, %v227
    %229 = vmatmul.f32.gmra.mxu0 %v208
    %v230 = vpop.f32.mrf.mxu0
    %v231 = vadd.f32 %v202, %v230
    %232 = vdwg.mxu0
    %233 = vst.msk [vmem:[#allocation5] sm:$0xff] %vm65, %v228
    %234 = vst.msk [vmem:[#allocation5 + $0x8] sm:$0xff] %vm65, %v231
    // Predicated region
    $region42: #{tpu_custom_call.1} parent=1 // pred_check
      _
    $region43: #{tpu_custom_call.1} parent=1 // pred_check_branch
      %236 = sbr.rel (0) target = $region45
    $region44: #{tpu_custom_call.1} parent=1 // pred_region
      _
    $region45: #{tpu_custom_call.1} parent=1 // pred_fallthru
      _
    // Predicated region
    $region46: #{tpu_custom_call.1} parent=1 // pred_check
      _
    $region47: #{tpu_custom_call.1} parent=1 // pred_check_branch
      %238 = sbr.rel (0) target = $region49
    $region48: #{tpu_custom_call.1} parent=1 // pred_region
      %240 = vsyncadd [#allocation4], 0
      %s241 = sshll.u32 [#allocation5], 4
      %s242 = int_to_ptr.vmem [resolvable:$true] %s241
      %s243 = sshll.u32 %s10, 4
      %s244 = int_to_ptr.hbm [resolvable:$true] %s243
      %249 = dma.vmem_to_hbm [thread:$0]  %s242, 256, %s244, [#allocation4], 128, 128, 8
    $region49: #{tpu_custom_call.1} parent=1 // pred_fallthru
      _
    // Predicated region
    $region50: #{tpu_custom_call.1} parent=1 // pred_check
      _
    $region51: #{tpu_custom_call.1} parent=1 // pred_check_branch
      %251 = sbr.rel (0) target = $region53
    $region52: #{tpu_custom_call.1} parent=1 // pred_region
      _
    $region53: #{tpu_custom_call.1} parent=1 // pred_fallthru
      _
    // Predicated region
    $region54: #{tpu_custom_call.1} parent=1 // pred_check
      _
    $region55: #{tpu_custom_call.1} parent=1 // pred_check_branch
      %253 = sbr.rel (0) target = $region57
    $region56: #{tpu_custom_call.1} parent=1 // pred_region
      %255 = dma.done [#allocation4], 256
    $region57: #{tpu_custom_call.1} parent=1 // pred_fallthru
      _
    %256 = vsyncpa [#allocation3], 1
    %257 = vsyncpa [#allocation4], 1

</llo_original>
